<compile_context>
chip_gen: v6e
topology: v6e:2x2x1
jax: 0.10.0
libtpu: 0.0.40
codegen_flags: <defaults>
</compile_context>

<pallas_src>
import functools

import jax
import jax.numpy as jnp
from jax.experimental import pallas as pl
from jax.experimental.pallas import tpu as pltpu

LANE = 128      # vreg lane width
SUBLANE = 8     # f32 sublane group
K_ALIGN = 32    # contraction-dim alignment for bf16 operands


def _round_up(x, m):
    return (x + m - 1) // m * m


def mlp_kernel(x_ref, w1_ref, b1_ref, w2_ref, b2_ref, o_ref):
    # First Linear: (TM, 32) bf16 @ (32, 256) bf16 -> f32 accumulators (MXU).
    h = jnp.dot(x_ref[...], w1_ref[...], preferred_element_type=jnp.float32)
    # Bias + ReLU epilogue in f32 (v5e has no bf16 VPU path; free elsewhere).
    h = jnp.maximum(h + b1_ref[...], 0.0)
    # Second Linear: (TM, 256) bf16 @ (256, 128 padded) bf16 -> f32.
    y = jnp.dot(h.astype(jnp.bfloat16), w2_ref[...],
                preferred_element_type=jnp.float32)
    # Lane-dense (128-wide) unmasked store; bf16 halves writeback bytes.
    o_ref[...] = (y + b2_ref[...]).astype(o_ref.dtype)


def prepare_params(w1, b1, w2, b2):
    """One-time layout plumbing: bf16 weights, K padded to 32, out cols to 128.

    Call this once at init and reuse the result for every forward call so the
    cast/pad passes over the weights are not re-run per call.
    """
    d_in, d_hidden = w1.shape
    d_out = w2.shape[1]
    k_pad = _round_up(d_in, K_ALIGN)
    n_pad = _round_up(d_out, LANE)

    w1_p = jnp.zeros((k_pad, d_hidden), jnp.bfloat16).at[:d_in].set(
        w1.astype(jnp.bfloat16))
    b1_p = jnp.reshape(b1, (1, d_hidden)).astype(jnp.float32)
    w2_p = jnp.zeros((d_hidden, n_pad), jnp.bfloat16).at[:, :d_out].set(
        w2.astype(jnp.bfloat16))
    b2_p = jnp.zeros((1, n_pad), jnp.float32).at[:, :d_out].set(
        jnp.reshape(b2, (1, d_out)).astype(jnp.float32))
    return w1_p, b1_p, w2_p, b2_p, d_out


@functools.partial(jax.jit, static_argnames=("d_out",))
def my_sequential_forward(x, w1_p, b1_p, w2_p, b2_p, *, d_out):
    """Fused Linear(20,256) -> ReLU -> Linear(256,10) in one Pallas kernel."""
    B, d_in = x.shape
    k_pad, d_hidden = w1_p.shape
    n_pad = w2_p.shape[1]

    # ---- batch tiling (wrapper-side, static) -------------------------------
    b_min = _round_up(max(B, 1), SUBLANE)
    if b_min <= 256:
        tm = b_min                                   # single step: latency regime
    elif b_min <= 1024:
        tm = _round_up((b_min + 1) // 2, 16)         # >=2 steps -> both v7x TCs
    else:
        tm = 512                                     # ~85% of HBM roofline tile
    b_pad = _round_up(b_min, tm)

    # Pad/cast x in one fused op; skip entirely if already laid out.
    if (B, d_in) == (b_pad, k_pad) and x.dtype == jnp.bfloat16:
        x_p = x
    else:
        x_p = jnp.zeros((b_pad, k_pad), jnp.bfloat16).at[:B, :d_in].set(
            x.astype(jnp.bfloat16))

    grid = (b_pad // tm,)

    cost = pl.CostEstimate(
        flops=2 * b_pad * (k_pad * d_hidden + d_hidden * n_pad),
        transcendentals=0,
        bytes_accessed=(x_p.size * 2 + w1_p.size * 2 + w2_p.size * 2
                        + b1_p.size * 4 + b2_p.size * 4 + b_pad * n_pad * 2),
    )

    out_padded = pl.pallas_call(
        mlp_kernel,
        out_shape=jax.ShapeDtypeStruct((b_pad, n_pad), jnp.bfloat16),
        grid=grid,
        in_specs=[
            pl.BlockSpec((tm, k_pad), lambda i: (i, 0)),        # x: tiled on M
            pl.BlockSpec((k_pad, d_hidden), lambda i: (0, 0)),  # w1: resident
            pl.BlockSpec((1, d_hidden), lambda i: (0, 0)),      # b1: resident
            pl.BlockSpec((d_hidden, n_pad), lambda i: (0, 0)),  # w2: resident
            pl.BlockSpec((1, n_pad), lambda i: (0, 0)),         # b2: resident
        ],
        out_specs=pl.BlockSpec((tm, n_pad), lambda i: (i, 0)),
        compiler_params=pltpu.CompilerParams(
            dimension_semantics=("parallel",)),                 # megacore split
        cost_estimate=cost,
    )(x_p, w1_p, b1_p, w2_p, b2_p)

    # Strip batch / lane padding; cast back to the caller's dtype.
    return out_padded[:B, :d_out].astype(x.dtype)


def _reference(x, w1, b1, w2, b2):
    # Emulates the kernel's quantization (bf16 operands, f32 accumulation,
    # bf16 re-cast of hidden activations and of the output) so the tight
    # comparison is meaningful.
    xb = x.astype(jnp.bfloat16).astype(jnp.float32)
    w1b = w1.astype(jnp.bfloat16).astype(jnp.float32)
    w2b = w2.astype(jnp.bfloat16).astype(jnp.float32)
    h = jnp.maximum(xb @ w1b + b1.reshape(1, -1), 0.0)
    h = h.astype(jnp.bfloat16).astype(jnp.float32)
    y = h @ w2b + b2.reshape(1, -1)
    return y.astype(jnp.bfloat16).astype(jnp.float32)


if __name__ == "__main__":
    key = jax.random.PRNGKey(0)
    k_x, k_w1, k_b1, k_w2, k_b2 = jax.random.split(key, 5)

    batch, d_in, d_hidden, d_out = 2, 20, 256, 10

    # X = torch.rand(2, 20)  -> uniform [0, 1)
    x = jax.random.uniform(k_x, (batch, d_in), dtype=jnp.float32)

    # Deterministic parameter init (torch.nn.Linear-style uniform bounds).
    bound1 = 1.0 / jnp.sqrt(d_in)
    w1 = jax.random.uniform(k_w1, (d_in, d_hidden), jnp.float32, -bound1, bound1)
    b1 = jax.random.uniform(k_b1, (1, d_hidden), jnp.float32, -bound1, bound1)

    bound2 = 1.0 / jnp.sqrt(d_hidden)
    w2 = jax.random.uniform(k_w2, (d_hidden, d_out), jnp.float32, -bound2, bound2)
    b2 = jax.random.uniform(k_b2, (1, d_out), jnp.float32, -bound2, bound2)

    # One-time parameter layout prep (hoisted out of the per-call forward).
    w1_p, b1_p, w2_p, b2_p, n_out = prepare_params(w1, b1, w2, b2)

    out = my_sequential_forward(x, w1_p, b1_p, w2_p, b2_p, d_out=n_out)
    out = jax.block_until_ready(out)

    ref = _reference(x, w1, b1, w2, b2)
    ref_f32 = jnp.maximum(x @ w1 + b1, 0.0) @ w2 + b2

    assert out.shape == (batch, d_out), out.shape
    # Tight check vs. a reference that reproduces the bf16 quantization.
    assert jnp.allclose(out, ref, atol=2e-2, rtol=2e-2), "mismatch vs bf16 reference"
    # Loose sanity check vs. the pure-f32 PyTorch-equivalent forward.
    assert jnp.allclose(out, ref_f32, atol=5e-2, rtol=5e-2), "mismatch vs f32 reference"

    print("KERNEL_OK")
</pallas_src>

<mosaic_0001>
module attributes {stable_mosaic.version = 11 : i64} {
  func.func @mlp_kernel(%arg0: i32, %arg1: memref<8x32xbf16, #tpu.memory_space<vmem>>, %arg2: memref<32x256xbf16, #tpu.memory_space<vmem>>, %arg3: memref<1x256xf32, #tpu.memory_space<vmem>>, %arg4: memref<256x128xbf16, #tpu.memory_space<vmem>>, %arg5: memref<1x128xf32, #tpu.memory_space<vmem>>, %arg6: memref<8x128xbf16, #tpu.memory_space<vmem>>) attributes {dimension_semantics = [#tpu.dimension_semantics<parallel>], iteration_bounds = array<i64: 1>, scalar_prefetch = 0 : i64, scratch_operands = 0 : i64, tpu.core_type = #tpu.core_type<tc>, window_params = [{transform_indices = @transform_0, window_bounds = array<i64: 8, 32>}, {pipeline_mode = #tpu.pipeline_mode<synchronous>, transform_indices = @transform_1, window_bounds = array<i64: 32, 256>}, {pipeline_mode = #tpu.pipeline_mode<synchronous>, transform_indices = @transform_2, window_bounds = array<i64: 1, 256>}, {pipeline_mode = #tpu.pipeline_mode<synchronous>, transform_indices = @transform_3, window_bounds = array<i64: 256, 128>}, {pipeline_mode = #tpu.pipeline_mode<synchronous>, transform_indices = @transform_4, window_bounds = array<i64: 1, 128>}, {transform_indices = @transform_5, window_bounds = array<i64: 8, 128>}]} {
    %c0 = arith.constant 0 : index
    %c0_0 = arith.constant 0 : index
    %0 = vector.load %arg1[%c0, %c0_0] : memref<8x32xbf16, #tpu.memory_space<vmem>>, vector<8x32xbf16>
    %c0_1 = arith.constant 0 : index
    %c0_2 = arith.constant 0 : index
    %1 = vector.load %arg2[%c0_1, %c0_2] : memref<32x256xbf16, #tpu.memory_space<vmem>>, vector<32x256xbf16>
    %cst = arith.constant dense<0.000000e+00> : vector<8x256xf32>
    %2 = tpu.matmul %0, %1, %cst {dimension_numbers = #tpu.dot_dimension_numbers<[1], [0], [0], [1], [0, 0, 1, 1], [], []>} : vector<8x32xbf16>, vector<32x256xbf16>, vector<8x256xf32> -> vector<8x256xf32>
    %c0_3 = arith.constant 0 : index
    %c0_4 = arith.constant 0 : index
    %3 = vector.load %arg3[%c0_3, %c0_4] : memref<1x256xf32, #tpu.memory_space<vmem>>, vector<1x256xf32>
    %4 = vector.broadcast %3 : vector<1x256xf32> to vector<8x256xf32>
    %5 = arith.addf %2, %4 : vector<8x256xf32>
    %cst_5 = arith.constant 0.000000e+00 : f32
    %6 = vector.broadcast %cst_5 : f32 to vector<8x256xf32>
    %7 = arith.maximumf %5, %6 : vector<8x256xf32>
    %8 = arith.truncf %7 : vector<8x256xf32> to vector<8x256xbf16>
    %c0_6 = arith.constant 0 : index
    %c0_7 = arith.constant 0 : index
    %9 = vector.load %arg4[%c0_6, %c0_7] : memref<256x128xbf16, #tpu.memory_space<vmem>>, vector<256x128xbf16>
    %cst_8 = arith.constant dense<0.000000e+00> : vector<8x128xf32>
    %10 = tpu.matmul %8, %9, %cst_8 {dimension_numbers = #tpu.dot_dimension_numbers<[1], [0], [0], [1], [0, 0, 1, 1], [], []>} : vector<8x256xbf16>, vector<256x128xbf16>, vector<8x128xf32> -> vector<8x128xf32>
    %c0_9 = arith.constant 0 : index
    %c0_10 = arith.constant 0 : index
    %11 = vector.load %arg5[%c0_9, %c0_10] : memref<1x128xf32, #tpu.memory_space<vmem>>, vector<1x128xf32>
    %12 = vector.broadcast %11 : vector<1x128xf32> to vector<8x128xf32>
    %13 = arith.addf %10, %12 : vector<8x128xf32>
    %14 = arith.truncf %13 : vector<8x128xf32> to vector<8x128xbf16>
    %c0_11 = arith.constant 0 : index
    %c0_12 = arith.constant 0 : index
    %15 = vector.load %arg6[%c0_11, %c0_12] : memref<8x128xbf16, #tpu.memory_space<vmem>>, vector<8x128xbf16>
    tpu.vector_store %arg6[%c0_11, %c0_12], %14 {strides = array<i32>} : memref<8x128xbf16, #tpu.memory_space<vmem>>, vector<8x128xbf16>,
    return
  }
  func.func @transform_0(%arg0: i32) -> (i32, i32) {
    %c0_i32 = arith.constant 0 : i32
    %c0_i32_0 = arith.constant 0 : i32
    return %arg0, %c0_i32 : i32, i32
  }
  func.func @transform_1(%arg0: i32) -> (i32, i32) {
    %c0_i32 = arith.constant 0 : i32
    %c0_i32_0 = arith.constant 0 : i32
    %c0_i32_1 = arith.constant 0 : i32
    return %c0_i32, %c0_i32_0 : i32, i32
  }
  func.func @transform_2(%arg0: i32) -> (i32, i32) {
    %c0_i32 = arith.constant 0 : i32
    %c0_i32_0 = arith.constant 0 : i32
    %c0_i32_1 = arith.constant 0 : i32
    return %c0_i32, %c0_i32_0 : i32, i32
  }
  func.func @transform_3(%arg0: i32) -> (i32, i32) {
    %c0_i32 = arith.constant 0 : i32
    %c0_i32_0 = arith.constant 0 : i32
    %c0_i32_1 = arith.constant 0 : i32
    return %c0_i32, %c0_i32_0 : i32, i32
  }
  func.func @transform_4(%arg0: i32) -> (i32, i32) {
    %c0_i32 = arith.constant 0 : i32
    %c0_i32_0 = arith.constant 0 : i32
    %c0_i32_1 = arith.constant 0 : i32
    return %c0_i32, %c0_i32_0 : i32, i32
  }
  func.func @transform_5(%arg0: i32) -> (i32, i32) {
    %c0_i32 = arith.constant 0 : i32
    %c0_i32_0 = arith.constant 0 : i32
    return %arg0, %c0_i32 : i32, i32
  }
}

</mosaic_0001>

<llo_original>
// kernel: my_sequential_forward.1
$region0: #{my_sequential_forward.1}
  #allocation0 [shape = 'u32[]', space=smem, size = 0x4, offset = 0x4, fixed_abs, tag = 'smem constant byte address 0x4 - core index']
  #allocation1 [shape = 'u32[144,128]{1,0:T(1,128)}', space=vmem, size = 0x12000, scoped, tag = 'internal scratch']
  %s0 = inlined_call_operand.vmem [shape: bf16[8,32], index: 0, kind: input, shape index: {}]
  %s1 = inlined_call_operand.hbm [shape: bf16[32,256], index: 1, kind: input, shape index: {}]
  %s2 = inlined_call_operand.vmem [shape: f32[1,256], index: 2, kind: input, shape index: {}]
  %s3 = inlined_call_operand.hbm [shape: bf16[256,128], index: 3, kind: input, shape index: {}]
  %s4 = inlined_call_operand.vmem [shape: f32[1,128], index: 4, kind: input, shape index: {}]
  %s5 = inlined_call_operand.vmem [shape: bf16[8,128], index: 5, kind: output, shape index: {}]
  %s6 = sld [smem:[#allocation0]]
  $region38: #{my_sequential_forward.1} parent=0
    _
  %s8 = ssub.s32 1, %s6
  %s9 = scalar_select 0, %s8, %s6
  $region1: #{my_sequential_forward.1} parent=0
    #allocation2 [shape = 'u8[16384]{0}', space=vmem, size = 0x4000, scoped, tag = 'input window, operand 1, single buffered']
    #allocation3 [shape = 's32[1]{0}', space=sflag, size = 0x4, scoped, tag = 'scoped memory for my_sequential_forward.1']
    #allocation4 [shape = 'u8[65536]{0}', space=vmem, size = 0x10000, scoped, tag = 'input window, operand 3, single buffered']
    #allocation5 [shape = 's32[1]{0}', space=sflag, size = 0x4, scoped, tag = 'scoped memory for my_sequential_forward.1']
    %10 = vsyncpa [#allocation3], 0
    %11 = vsyncpa [#allocation5], 0
    // Predicated region
    $region2: #{my_sequential_forward.1} parent=1 // pred_check
      _
    $region3: #{my_sequential_forward.1} parent=1 // pred_check_branch
      %13 = sbr.rel (0) target = $region5
    $region4: #{my_sequential_forward.1} parent=1 // pred_region
      _
    $region5: #{my_sequential_forward.1} parent=1 // pred_fallthru
      _
    // Predicated region
    $region6: #{my_sequential_forward.1} parent=1 // pred_check
      _
    $region7: #{my_sequential_forward.1} parent=1 // pred_check_branch
      %15 = sbr.rel (0) target = $region9
    $region8: #{my_sequential_forward.1} parent=1 // pred_region
      %s17 = ssub.s32 512, 512
      %18 = vsyncadd [#allocation3], %s17
      %s19 = sshll.u32 [#allocation2], 4
      %s20 = int_to_ptr.vmem [resolvable:$true] %s19
      %25 = dma.hbm_to_vmem [thread:$0]  %s1, 512, %s20, [#allocation3], 128, 128, 8
    $region9: #{my_sequential_forward.1} parent=1 // pred_fallthru
      _
    // Predicated region
    $region10: #{my_sequential_forward.1} parent=1 // pred_check
      _
    $region11: #{my_sequential_forward.1} parent=1 // pred_check_branch
      %27 = sbr.rel (0) target = $region13
    $region12: #{my_sequential_forward.1} parent=1 // pred_region
      _
    $region13: #{my_sequential_forward.1} parent=1 // pred_fallthru
      _
    // Predicated region
    $region14: #{my_sequential_forward.1} parent=1 // pred_check
      _
    $region15: #{my_sequential_forward.1} parent=1 // pred_check_branch
      %29 = sbr.rel (0) target = $region17
    $region16: #{my_sequential_forward.1} parent=1 // pred_region
      %s31 = ssub.s32 2048, 2048
      %32 = vsyncadd [#allocation5], %s31
      %s33 = sshll.u32 [#allocation4], 4
      %s34 = int_to_ptr.vmem [resolvable:$true] %s33
      %39 = dma.hbm_to_vmem [thread:$0]  %s3, 2048, %s34, [#allocation5], 64, 64, 4
    $region17: #{my_sequential_forward.1} parent=1 // pred_fallthru
      _
    // Predicated region
    $region18: #{my_sequential_forward.1} parent=1 // pred_check
      _
    $region19: #{my_sequential_forward.1} parent=1 // pred_check_branch
      %41 = sbr.rel (0) target = $region21
    $region20: #{my_sequential_forward.1} parent=1 // pred_region
      _
    $region21: #{my_sequential_forward.1} parent=1 // pred_fallthru
      _
    // Predicated region
    $region22: #{my_sequential_forward.1} parent=1 // pred_check
      _
    $region23: #{my_sequential_forward.1} parent=1 // pred_check_branch
      %43 = sbr.rel (0) target = $region25
    $region24: #{my_sequential_forward.1} parent=1 // pred_region
      %44 = dma.done [#allocation3], 512
    $region25: #{my_sequential_forward.1} parent=1 // pred_fallthru
      _
    // Predicated region
    $region26: #{my_sequential_forward.1} parent=1 // pred_check
      _
    $region27: #{my_sequential_forward.1} parent=1 // pred_check_branch
      %46 = sbr.rel (0) target = $region29
    $region28: #{my_sequential_forward.1} parent=1 // pred_region
      %47 = dma.done [#allocation5], 2048
    $region29: #{my_sequential_forward.1} parent=1 // pred_fallthru
      _
    %v49 = vld [vmem:[%s0] sm:$0xf]
    %v50 = vld [vmem:[#allocation2] sm:$0xff]
    %v51 = vld [vmem:[#allocation2 + $0x8] sm:$0xff]
    %v52 = vld [vmem:[#allocation2 + $0x10] sm:$0xff]
    %v53 = vld [vmem:[#allocation2 + $0x18] sm:$0xff]
    %v54 = vld [vmem:[%s2] sm:$0x3]
    %v56 = vlaneseq
    %v57 = vshrl.u32 %v56, 7
    %v58 = vsub.s32 0, %v57
    %v59 = vrot.slane %v54, %v58
    %v60 = vlaneseq
    %v61 = vshrl.u32 %v60, 7
    %v62 = vsub.s32 1, %v61
    %v63 = vrot.slane %v54, %v62
    %v70 = vunpack.c.l.b16 %v50
    %v71 = vunpack.c.h.b16 %v50
    %v72 = vunpack.c.l.b16 %v51
    %v73 = vunpack.c.h.b16 %v51
    %v74 = vunpack.c.l.b16 %v52
    %v75 = vunpack.c.h.b16 %v52
    %v76 = vunpack.c.l.b16 %v53
    %v77 = vunpack.c.h.b16 %v53
    %v78 = vpack.c.b16 %v72, %v70
    %v79 = vpack.c.b16 %v73, %v71
    %v80 = vpack.c.b16 %v76, %v74
    %v81 = vpack.c.b16 %v77, %v75
    %vm86 = vcmask 261120
    %v88 = vsel %vm86, %v49, 0
    %90 = vmatprep.subr.bf16.mxu0 0
    %91 = vmatpush1.bf16.msra.mxu0 0
    %92 = vmatprep.subr.bf16.mxu0 0
    %93 = vmatpush1.bf16.msra.mxu0 0
    %94 = vmatprep.subr.bf16.mxu0 0
    %95 = vmatpush1.bf16.msra.mxu0 0
    %96 = vmatprep.subr.bf16.mxu0 0
    %97 = vmatpush1.bf16.msra.mxu0 0
    %98 = vmatprep.subr.bf16.mxu0 0
    %99 = vmatpush1.bf16.msra.mxu0 0
    %100 = vmatprep.subr.bf16.mxu0 0
    %101 = vmatpush1.bf16.msra.mxu0 0
    %102 = vmatprep.subr.bf16.mxu0 %v81
    %103 = vmatpush1.bf16.msra.mxu0 %v80
    %104 = vmatprep.subr.bf16.mxu0 %v79
    %105 = vmatpush1.bf16.msra.mxu0 %v78
    %106 = vmatprep.subr.bf16.mxu0 0
    %107 = vmatpush2.bf16.msra.mxu0 0
    %108 = vmatprep.subr.bf16.mxu0 0
    %109 = vmatpush2.bf16.msra.mxu0 0
    %110 = vmatprep.subr.bf16.mxu0 0
    %111 = vmatpush2.bf16.msra.mxu0 0
    %112 = vmatprep.subr.bf16.mxu0 0
    %113 = vmatpush2.bf16.msra.mxu0 0
    %114 = vmatprep.subr.bf16.mxu0 0
    %115 = vmatpush2.bf16.msra.mxu0 0
    %116 = vmatprep.subr.bf16.mxu0 0
    %117 = vmatpush2.bf16.msra.mxu0 0
    %118 = vmatprep.subr.bf16.mxu0 0
    %119 = vmatpush2.bf16.msra.mxu0 0
    %120 = vmatprep.subr.bf16.mxu0 0
    %121 = vmatpush2.bf16.msra.mxu0 0
    %122 = vmatprep.mubr.bf16.mxu0 0
    %123 = vmatmul.mubr.bf16.gmra.mxu0 %v88
    %v124 = vpop.f32.mrf.mxu0
    %v125 = vadd.f32 %v59, %v124
    %v126 = vpop.f32.mrf.mxu0
    %v127 = vadd.f32 %v63, %v126
    %v128 = vpop.f32.mrf.mxu0
    %v129 = vpop.f32.mrf.mxu0
    %130 = vdwg.mxu0
    %v131 = vmax.f32 %v125, 0.0
    %v132 = vmax.f32 %v127, 0.0
    %v133 = vpack.c.bf16 %v131, %v131
    %v134 = vpack.c.bf16 %v132, %v132
    %v135 = vld [vmem:[#allocation4] sm:$0xf]
    %v136 = vld [vmem:[#allocation4 + $0x4] sm:$0xf]
    %v137 = vld [vmem:[#allocation4 + $0x8] sm:$0xf]
    %v138 = vld [vmem:[#allocation4 + $0xc] sm:$0xf]
    %v139 = vld [vmem:[#allocation4 + $0x10] sm:$0xf]
    %v140 = vld [vmem:[#allocation4 + $0x14] sm:$0xf]
    %v141 = vld [vmem:[#allocation4 + $0x18] sm:$0xf]
    %v142 = vld [vmem:[#allocation4 + $0x1c] sm:$0xf]
    %v143 = vld [vmem:[#allocation4 + $0x20] sm:$0xf]
    %v144 = vld [vmem:[#allocation4 + $0x24] sm:$0xf]
    %v145 = vld [vmem:[#allocation4 + $0x28] sm:$0xf]
    %v146 = vld [vmem:[#allocation4 + $0x2c] sm:$0xf]
    %v147 = vld [vmem:[#allocation4 + $0x30] sm:$0xf]
    %v148 = vld [vmem:[#allocation4 + $0x34] sm:$0xf]
    %v149 = vld [vmem:[#allocation4 + $0x38] sm:$0xf]
    %v150 = vld [vmem:[#allocation4 + $0x3c] sm:$0xf]
    %v151 = vld [vmem:[#allocation4 + $0x40] sm:$0xf]
    %v152 = vld [vmem:[#allocation4 + $0x44] sm:$0xf]
    %v153 = vld [vmem:[#allocation4 + $0x48] sm:$0xf]
    %v154 = vld [vmem:[#allocation4 + $0x4c] sm:$0xf]
    %v155 = vld [vmem:[#allocation4 + $0x50] sm:$0xf]
    %v156 = vld [vmem:[#allocation4 + $0x54] sm:$0xf]
    %v157 = vld [vmem:[#allocation4 + $0x58] sm:$0xf]
    %v158 = vld [vmem:[#allocation4 + $0x5c] sm:$0xf]
    %v159 = vld [vmem:[#allocation4 + $0x60] sm:$0xf]
    %v160 = vld [vmem:[#allocation4 + $0x64] sm:$0xf]
    %v161 = vld [vmem:[#allocation4 + $0x68] sm:$0xf]
    %v162 = vld [vmem:[#allocation4 + $0x6c] sm:$0xf]
    %v163 = vld [vmem:[#allocation4 + $0x70] sm:$0xf]
    %v164 = vld [vmem:[#allocation4 + $0x74] sm:$0xf]
    %v165 = vld [vmem:[#allocation4 + $0x78] sm:$0xf]
    %v166 = vld [vmem:[#allocation4 + $0x7c] sm:$0xf]
    %v167 = vld [vmem:[%s4] sm:$0x1]
    %v169 = vlaneseq
    %v170 = vshrl.u32 %v169, 7
    %v171 = vsub.s32 0, %v170
    %v172 = vrot.slane %v167, %v171
    %v206 = vunpack.c.l.b16 %v135
    %v207 = vunpack.c.l.b16 %v136
    %v208 = vunpack.c.l.b16 %v137
    %v209 = vunpack.c.l.b16 %v138
    %v210 = vunpack.c.l.b16 %v139
    %v211 = vunpack.c.l.b16 %v140
    %v212 = vunpack.c.l.b16 %v141
    %v213 = vunpack.c.l.b16 %v142
    %v214 = vunpack.c.l.b16 %v143
    %v215 = vunpack.c.l.b16 %v144
    %v216 = vunpack.c.l.b16 %v145
    %v217 = vunpack.c.l.b16 %v146
    %v218 = vunpack.c.l.b16 %v147
    %v219 = vunpack.c.l.b16 %v148
    %v220 = vunpack.c.l.b16 %v149
    %v221 = vunpack.c.l.b16 %v150
    %v222 = vunpack.c.l.b16 %v151
    %v223 = vunpack.c.l.b16 %v152
    %v224 = vunpack.c.l.b16 %v153
    %v225 = vunpack.c.l.b16 %v154
    %v226 = vunpack.c.l.b16 %v155
    %v227 = vunpack.c.l.b16 %v156
    %v228 = vunpack.c.l.b16 %v157
    %v229 = vunpack.c.l.b16 %v158
    %v230 = vunpack.c.l.b16 %v159
    %v231 = vunpack.c.l.b16 %v160
    %v232 = vunpack.c.l.b16 %v161
    %v233 = vunpack.c.l.b16 %v162
    %v234 = vunpack.c.l.b16 %v163
    %v235 = vunpack.c.l.b16 %v164
    %v236 = vunpack.c.l.b16 %v165
    %v237 = vunpack.c.l.b16 %v166
    %v238 = vpack.c.b16 %v207, %v206
    %v239 = vpack.c.b16 %v209, %v208
    %v240 = vpack.c.b16 %v211, %v210
    %v241 = vpack.c.b16 %v213, %v212
    %v242 = vpack.c.b16 %v215, %v214
    %v243 = vpack.c.b16 %v217, %v216
    %v244 = vpack.c.b16 %v219, %v218
    %v245 = vpack.c.b16 %v221, %v220
    %v246 = vpack.c.b16 %v223, %v222
    %v247 = vpack.c.b16 %v225, %v224
    %v248 = vpack.c.b16 %v227, %v226
    %v249 = vpack.c.b16 %v229, %v228
    %v250 = vpack.c.b16 %v231, %v230
    %v251 = vpack.c.b16 %v233, %v232
    %v252 = vpack.c.b16 %v235, %v234
    %v253 = vpack.c.b16 %v237, %v236
    %270 = vmatprep.subr.bf16.mxu0 0
    %271 = vmatpush1.bf16.msra.mxu0 %v245
    %272 = vmatprep.subr.bf16.mxu0 0
    %273 = vmatpush1.bf16.msra.mxu0 %v244
    %274 = vmatprep.subr.bf16.mxu0 0
    %275 = vmatpush1.bf16.msra.mxu0 %v243
    %276 = vmatprep.subr.bf16.mxu0 0
    %277 = vmatpush1.bf16.msra.mxu0 %v242
    %278 = vmatprep.subr.bf16.mxu0 0
    %279 = vmatpush1.bf16.msra.mxu0 %v241
    %280 = vmatprep.subr.bf16.mxu0 0
    %281 = vmatpush1.bf16.msra.mxu0 %v240
    %282 = vmatprep.subr.bf16.mxu0 0
    %283 = vmatpush1.bf16.msra.mxu0 %v239
    %284 = vmatprep.subr.bf16.mxu0 0
    %285 = vmatpush1.bf16.msra.mxu0 %v238
    %286 = vmatprep.subr.bf16.mxu0 0
    %287 = vmatpush2.bf16.msra.mxu0 %v253
    %288 = vmatprep.subr.bf16.mxu0 0
    %289 = vmatpush2.bf16.msra.mxu0 %v252
    %290 = vmatprep.subr.bf16.mxu0 0
    %291 = vmatpush2.bf16.msra.mxu0 %v251
    %292 = vmatprep.subr.bf16.mxu0 0
    %293 = vmatpush2.bf16.msra.mxu0 %v250
    %294 = vmatprep.subr.bf16.mxu0 0
    %295 = vmatpush2.bf16.msra.mxu0 %v249
    %296 = vmatprep.subr.bf16.mxu0 0
    %297 = vmatpush2.bf16.msra.mxu0 %v248
    %298 = vmatprep.subr.bf16.mxu0 0
    %299 = vmatpush2.bf16.msra.mxu0 %v247
    %300 = vmatprep.subr.bf16.mxu0 0
    %301 = vmatpush2.bf16.msra.mxu0 %v246
    %302 = vmatprep.mubr.bf16.mxu0 %v134
    %303 = vmatmul.mubr.bf16.gmra.mxu0 %v133
    %v304 = vpop.f32.mrf.mxu0
    %v305 = vadd.f32 %v172, %v304
    %v306 = vpop.f32.mrf.mxu0
    %v307 = vpop.f32.mrf.mxu0
    %v308 = vpop.f32.mrf.mxu0
    %309 = vdwg.mxu0
    %v310 = vpack.c.bf16 %v305, %v305
    %311 = vst [vmem:[%s5] sm:$0xf] %v310
    // Predicated region
    $region30: #{my_sequential_forward.1} parent=1 // pred_check
      _
    $region31: #{my_sequential_forward.1} parent=1 // pred_check_branch
      %313 = sbr.rel (0) target = $region33
    $region32: #{my_sequential_forward.1} parent=1 // pred_region
      _
    $region33: #{my_sequential_forward.1} parent=1 // pred_fallthru
      _
    // Predicated region
    $region34: #{my_sequential_forward.1} parent=1 // pred_check
      _
    $region35: #{my_sequential_forward.1} parent=1 // pred_check_branch
      %315 = sbr.rel (0) target = $region37
    $region36: #{my_sequential_forward.1} parent=1 // pred_region
      _
    $region37: #{my_sequential_forward.1} parent=1 // pred_fallthru
      _
    %316 = vsyncpa [#allocation3], 1
    %317 = vsyncpa [#allocation5], 1

</llo_original>
